<compile_context>
chip_gen: v5e
topology: v5e:2x2
jax: 0.10.0
libtpu: 0.0.40
codegen_flags: <defaults>
</compile_context>

<pallas_src>
import math
from functools import partial

import jax
import jax.numpy as jnp
from jax.experimental import pallas as pl
from jax.experimental.pallas import tpu as pltpu


_VMEM_BUDGET = 20 * 1024 * 1024          # target working set
_VMEM_LIMIT = 32 * 1024 * 1024           # scoped VMEM limit passed to Mosaic


def _round_up(x, m):
    return ((x + m - 1) // m) * m


# ---------------------------------------------------------------------------
# Kernels
# ---------------------------------------------------------------------------
def _conv_matmul_kernel(p_ref, w_ref, b_ref, o_ref, acc_ref):
    # p_ref: (TM, TK)  w_ref: (TK, TN)  b_ref: (1, TN)  o_ref: (TM, TN)
    # acc_ref: (TM, TN) f32 scratch, resident across the K grid axis.
    @pl.when(pl.program_id(2) == 0)
    def _():
        acc_ref[...] = jnp.zeros_like(acc_ref)

    acc_ref[...] += jnp.dot(p_ref[...], w_ref[...],
                            preferred_element_type=jnp.float32)

    @pl.when(pl.program_id(2) == pl.num_programs(2) - 1)
    def _():
        o_ref[...] = (acc_ref[...] + b_ref[...].astype(jnp.float32)).astype(o_ref.dtype)


def _avgpool_taps_kernel(p_ref, o_ref):
    # p_ref: (4, TM, C)   o_ref: (TM, C)
    ntaps = p_ref.shape[0]
    acc = p_ref[0].astype(jnp.float32)
    for t in range(1, ntaps):            # static unroll over the 2x2 window
        acc = acc + p_ref[t].astype(jnp.float32)
    o_ref[...] = (acc * (1.0 / float(ntaps))).astype(o_ref.dtype)


# ---------------------------------------------------------------------------
# Glue (im2col / tile selection) in plain JAX / Python
# ---------------------------------------------------------------------------
def _im2col_stride2(x_nchw, ksize, padding):
    """Returns (N*Ho*Wo, ksize*ksize*C) folded-tap slab and (N, Ho, Wo)."""
    n, c, h, w = x_nchw.shape
    ho = (h + 2 * padding - ksize) // 2 + 1
    wo = (w + 2 * padding - ksize) // 2 + 1
    x = jnp.transpose(x_nchw, (0, 2, 3, 1))  # NHWC (channel -> lane dim)
    if padding:
        x = jnp.pad(x, ((0, 0), (padding, padding), (padding, padding), (0, 0)))
    cols = []
    for kh in range(ksize):
        for kw in range(ksize):
            cols.append(x[:, kh:kh + 2 * ho:2, kw:kw + 2 * wo:2, :])
    patches = jnp.concatenate(cols, axis=-1).reshape(n * ho * wo, ksize * ksize * c)
    return patches, (n, ho, wo)


def _choose_n_tile(dim, max_tile=512):
    """dim is either < 128 (kept whole) or a multiple of 128."""
    if dim <= max_tile:
        return dim, dim
    for t in range(max_tile, 127, -128):     # prefer a divisor (no wasted lanes)
        if dim % t == 0:
            return t, dim
    return max_tile, _round_up(dim, max_tile)


def _choose_k_tile(k, max_tile=2048):
    if k <= max_tile:
        return k, k
    for t in range(min(max_tile, 1024), 127, -128):
        if k % t == 0:
            return t, k
    return 512, _round_up(k, 512)


def _pick_tm(m, per_row_bytes, resident_bytes, budget_bytes=_VMEM_BUDGET):
    avail = max(budget_bytes - resident_bytes, per_row_bytes)
    tm = int(avail // max(per_row_bytes, 1))
    tm = max(8, min(1024, (tm // 8) * 8))
    tm = min(tm, _round_up(m, 8))
    return max(tm, 8)


# ---------------------------------------------------------------------------
# Conv2d(channels, out_channels, 3, stride=2, padding) on NCHW x
# ---------------------------------------------------------------------------
@partial(jax.jit, static_argnames=("padding",))
def downsample_conv2d(x, weight, bias, *, padding=1):
    n, cin, h, w = x.shape
    cout = weight.shape[0]

    patches, (_, ho, wo) = _im2col_stride2(x, ksize=3, padding=padding)
    m = n * ho * wo
    k = 9 * cin

    # (Cout, Cin, KH, KW) -> (KH, KW, Cin, Cout) -> (9*Cin, Cout)
    # Column order (kh, kw, ci) matches the tap concatenation order above.
    w_fold = jnp.transpose(weight, (2, 3, 1, 0)).reshape(k, cout)
    b2 = bias.reshape(1, cout).astype(jnp.float32)

    # Lane-dense output stores: pad Cout to a multiple of 128 when large enough.
    cout_p = _round_up(cout, 128) if cout >= 128 else cout
    tn, cout_pp = _choose_n_tile(cout_p)
    tk, k_pp = _choose_k_tile(k)

    if cout_pp != cout:
        w_fold = jnp.pad(w_fold, ((0, 0), (0, cout_pp - cout)))
        b2 = jnp.pad(b2, ((0, 0), (0, cout_pp - cout)))
    if k_pp != k:
        patches = jnp.pad(patches, ((0, 0), (0, k_pp - k)))
        w_fold = jnp.pad(w_fold, ((0, k_pp - k), (0, 0)))

    in_isz = jnp.dtype(patches.dtype).itemsize
    w_isz = jnp.dtype(w_fold.dtype).itemsize
    out_isz = jnp.dtype(x.dtype).itemsize

    # double-buffered weight block + bias  /  double-buffered taps+out + f32 acc
    resident = 2 * tk * tn * w_isz + 2 * 2 * tn * 4
    per_row = 2 * tk * in_isz + 2 * tn * out_isz + tn * 4
    tm = _pick_tm(m, per_row, resident)

    m_pad = _round_up(m, tm)
    if m_pad != m:
        patches = jnp.pad(patches, ((0, m_pad - m), (0, 0)))

    cost = pl.CostEstimate(
        flops=2 * m_pad * k_pp * cout_pp,
        transcendentals=0,
        bytes_accessed=int(patches.size * in_isz + w_fold.size * w_isz
                           + b2.size * 4 + m_pad * cout_pp * out_isz),
    )

    out = pl.pallas_call(
        _conv_matmul_kernel,
        out_shape=jax.ShapeDtypeStruct((m_pad, cout_pp), x.dtype),
        grid_spec=pltpu.PrefetchScalarGridSpec(
            num_scalar_prefetch=0,
            grid=(m_pad // tm, cout_pp // tn, k_pp // tk),
            in_specs=[
                pl.BlockSpec((tm, tk), lambda i, j, kk: (i, kk)),   # taps
                pl.BlockSpec((tk, tn), lambda i, j, kk: (kk, j)),   # weights
                pl.BlockSpec((1, tn), lambda i, j, kk: (0, j)),     # bias
            ],
            out_specs=pl.BlockSpec((tm, tn), lambda i, j, kk: (i, j)),
            scratch_shapes=[pltpu.VMEM((tm, tn), jnp.float32)],
        ),
        compiler_params=pltpu.CompilerParams(
            dimension_semantics=("parallel", "parallel", "arbitrary"),
            vmem_limit_bytes=_VMEM_LIMIT,
        ),
        cost_estimate=cost,
    )(patches, w_fold, b2)

    out = out[:m, :cout]
    return out.reshape(n, ho, wo, cout).transpose(0, 3, 1, 2)


# ---------------------------------------------------------------------------
# AvgPool2d(kernel_size=2, stride=2) on NCHW x
# ---------------------------------------------------------------------------
@jax.jit
def downsample_avgpool2d(x):
    n, c, h, w = x.shape
    ho = (h - 2) // 2 + 1
    wo = (w - 2) // 2 + 1

    xh = jnp.transpose(x, (0, 2, 3, 1))  # NHWC
    taps = [xh[:, kh:kh + 2 * ho:2, kw:kw + 2 * wo:2, :].reshape(n * ho * wo, c)
            for kh in range(2) for kw in range(2)]
    taps = jnp.stack(taps, axis=0)       # (4, M, C)
    m = n * ho * wo

    isz = jnp.dtype(x.dtype).itemsize
    per_row = 2 * 4 * c * isz + 2 * c * isz
    tm = _pick_tm(m, per_row, 0)

    m_pad = _round_up(m, tm)
    if m_pad != m:
        taps = jnp.pad(taps, ((0, 0), (0, m_pad - m), (0, 0)))

    cost = pl.CostEstimate(
        flops=4 * m * c,
        transcendentals=0,
        bytes_accessed=int(taps.size * isz + m_pad * c * isz),
    )

    out = pl.pallas_call(
        _avgpool_taps_kernel,
        out_shape=jax.ShapeDtypeStruct((m_pad, c), x.dtype),
        grid_spec=pltpu.PrefetchScalarGridSpec(
            num_scalar_prefetch=0,
            grid=(m_pad // tm,),
            in_specs=[pl.BlockSpec((4, tm, c), lambda i: (0, i, 0))],
            out_specs=pl.BlockSpec((tm, c), lambda i: (i, 0)),
        ),
        compiler_params=pltpu.CompilerParams(
            dimension_semantics=("parallel",),
            vmem_limit_bytes=_VMEM_LIMIT,
        ),
        cost_estimate=cost,
    )(taps)

    out = out[:m]
    return out.reshape(n, ho, wo, c).transpose(0, 3, 1, 2)


# ---------------------------------------------------------------------------
# Module-equivalent wrapper
# ---------------------------------------------------------------------------
class Downsample:
    """JAX/Pallas equivalent of the PyTorch Downsample module (dims=2)."""

    def __init__(self, channels, use_conv, dims=2, out_channels=None, padding=1,
                 key=jax.random.PRNGKey(0)):
        # TODO(synk): dims=1 and dims=3 variants not implemented (2D is the used path).
        assert dims == 2, "only dims=2 is implemented"
        self.channels = channels
        self.out_channels = out_channels or channels
        self.use_conv = use_conv
        self.padding = padding
        if use_conv:
            # Deterministic PyTorch-style Conv2d init: U(-1/sqrt(fan_in), 1/sqrt(fan_in)).
            kw, kb = jax.random.split(key)
            fan_in = channels * 3 * 3
            bound = 1.0 / math.sqrt(fan_in)
            self.weight = jax.random.uniform(
                kw, (self.out_channels, channels, 3, 3), jnp.float32, -bound, bound)
            self.bias = jax.random.uniform(
                kb, (self.out_channels,), jnp.float32, -bound, bound)
        else:
            assert self.channels == self.out_channels
            self.weight = None
            self.bias = None

    def __call__(self, x):
        assert x.shape[1] == self.channels
        if self.use_conv:
            return downsample_conv2d(x, self.weight, self.bias, padding=self.padding)
        return downsample_avgpool2d(x)


# ---------------------------------------------------------------------------
# Demo / correctness check
# ---------------------------------------------------------------------------
if __name__ == "__main__":
    key = jax.random.PRNGKey(0)
    x = jax.random.normal(key, (2, 4, 16, 16), jnp.float32)  # NCHW, like PyTorch

    # --- use_conv=True path (Conv2d 3x3 stride 2 pad 1) ---
    ds_conv = Downsample(channels=4, use_conv=True, dims=2)
    y_conv = jax.block_until_ready(ds_conv(x))

    ref_conv = jax.lax.conv_general_dilated(
        x, ds_conv.weight, window_strides=(2, 2), padding=((1, 1), (1, 1)),
        dimension_numbers=("NCHW", "OIHW", "NCHW"),
    ) + ds_conv.bias[None, :, None, None]
    assert y_conv.shape == (2, 4, 8, 8)
    assert jnp.allclose(y_conv, ref_conv, atol=1e-5, rtol=1e-5)

    # --- use_conv=False path (AvgPool2d 2x2 stride 2) ---
    ds_pool = Downsample(channels=4, use_conv=False, dims=2)
    y_pool = jax.block_until_ready(ds_pool(x))

    ref_pool = x.reshape(2, 4, 8, 2, 8, 2).mean(axis=(3, 5))
    assert y_pool.shape == (2, 4, 8, 8)
    assert jnp.allclose(y_pool, ref_pool, atol=1e-5, rtol=1e-5)

    print("KERNEL_OK")
</pallas_src>

<mosaic_0001>
module attributes {stable_mosaic.version = 11 : i64} {
  func.func @_conv_matmul_kernel(%arg0: i32, %arg1: i32, %arg2: i32, %arg3: memref<128x36xf32, #tpu.memory_space<vmem>>, %arg4: memref<36x4xf32, #tpu.memory_space<vmem>>, %arg5: memref<1x4xf32, #tpu.memory_space<vmem>>, %arg6: memref<128x4xf32, #tpu.memory_space<vmem>>, %arg7: memref<128x4xf32, #tpu.memory_space<vmem>>) attributes {dimension_semantics = [#tpu.dimension_semantics<parallel>, #tpu.dimension_semantics<parallel>, #tpu.dimension_semantics<arbitrary>], iteration_bounds = array<i64: 1, 1, 1>, scalar_prefetch = 0 : i64, scratch_operands = 1 : i64, tpu.core_type = #tpu.core_type<tc>, window_params = [{transform_indices = @transform_0, window_bounds = array<i64: 128, 36>}, {transform_indices = @transform_1, window_bounds = array<i64: 36, 4>}, {transform_indices = @transform_2, window_bounds = array<i64: 1, 4>}, {transform_indices = @transform_3, window_bounds = array<i64: 128, 4>}]} {
    %c0_i32 = arith.constant 0 : i32
    %0 = arith.cmpi eq, %arg2, %c0_i32 : i32
    %1 = arith.extui %0 : i1 to i32
    %c0_i32_0 = arith.constant 0 : i32
    %2 = arith.cmpi ne, %1, %c0_i32_0 : i32
    scf.if %2 {
      %cst_10 = arith.constant 0.000000e+00 : f32
      %12 = vector.broadcast %cst_10 : f32 to vector<128x4xf32>
      %c0_11 = arith.constant 0 : index
      %c0_12 = arith.constant 0 : index
      %13 = vector.load %arg7[%c0_11, %c0_12] : memref<128x4xf32, #tpu.memory_space<vmem>>, vector<128x4xf32>
      tpu.vector_store %arg7[%c0_11, %c0_12], %12 {strides = array<i32>} : memref<128x4xf32, #tpu.memory_space<vmem>>, vector<128x4xf32>,
    } else {
    }
    %c0 = arith.constant 0 : index
    %c0_1 = arith.constant 0 : index
    %3 = vector.load %arg7[%c0, %c0_1] : memref<128x4xf32, #tpu.memory_space<vmem>>, vector<128x4xf32>
    %c0_2 = arith.constant 0 : index
    %c0_3 = arith.constant 0 : index
    %4 = vector.load %arg3[%c0_2, %c0_3] : memref<128x36xf32, #tpu.memory_space<vmem>>, vector<128x36xf32>
    %c0_4 = arith.constant 0 : index
    %c0_5 = arith.constant 0 : index
    %5 = vector.load %arg4[%c0_4, %c0_5] : memref<36x4xf32, #tpu.memory_space<vmem>>, vector<36x4xf32>
    %cst = arith.constant dense<0.000000e+00> : vector<128x4xf32>
    %6 = tpu.matmul %4, %5, %cst {dimension_numbers = #tpu.dot_dimension_numbers<[1], [0], [0], [1], [0, 0, 1, 1], [], []>} : vector<128x36xf32>, vector<36x4xf32>, vector<128x4xf32> -> vector<128x4xf32>
    %7 = arith.addf %3, %6 : vector<128x4xf32>
    %c0_6 = arith.constant 0 : index
    %c0_7 = arith.constant 0 : index
    %8 = vector.load %arg7[%c0_6, %c0_7] : memref<128x4xf32, #tpu.memory_space<vmem>>, vector<128x4xf32>
    tpu.vector_store %arg7[%c0_6, %c0_7], %7 {strides = array<i32>} : memref<128x4xf32, #tpu.memory_space<vmem>>, vector<128x4xf32>,
    %c0_i32_8 = arith.constant 0 : i32
    %9 = arith.cmpi eq, %arg2, %c0_i32_8 : i32
    %10 = arith.extui %9 : i1 to i32
    %c0_i32_9 = arith.constant 0 : i32
    %11 = arith.cmpi ne, %10, %c0_i32_9 : i32
    scf.if %11 {
      %c0_10 = arith.constant 0 : index
      %c0_11 = arith.constant 0 : index
      %12 = vector.load %arg7[%c0_10, %c0_11] : memref<128x4xf32, #tpu.memory_space<vmem>>, vector<128x4xf32>
      %c0_12 = arith.constant 0 : index
      %c0_13 = arith.constant 0 : index
      %13 = vector.load %arg5[%c0_12, %c0_13] : memref<1x4xf32, #tpu.memory_space<vmem>>, vector<1x4xf32>
      %14 = vector.broadcast %13 : vector<1x4xf32> to vector<128x4xf32>
      %15 = arith.addf %12, %14 : vector<128x4xf32>
      %c0_14 = arith.constant 0 : index
      %c0_15 = arith.constant 0 : index
      %16 = vector.load %arg6[%c0_14, %c0_15] : memref<128x4xf32, #tpu.memory_space<vmem>>, vector<128x4xf32>
      tpu.vector_store %arg6[%c0_14, %c0_15], %15 {strides = array<i32>} : memref<128x4xf32, #tpu.memory_space<vmem>>, vector<128x4xf32>,
    } else {
    }
    return
  }
  func.func @transform_0(%arg0: i32, %arg1: i32, %arg2: i32) -> (i32, i32) {
    %c0_i32 = arith.constant 0 : i32
    return %arg0, %arg2 : i32, i32
  }
  func.func @transform_1(%arg0: i32, %arg1: i32, %arg2: i32) -> (i32, i32) {
    %c0_i32 = arith.constant 0 : i32
    return %arg2, %arg1 : i32, i32
  }
  func.func @transform_2(%arg0: i32, %arg1: i32, %arg2: i32) -> (i32, i32) {
    %c0_i32 = arith.constant 0 : i32
    %c0_i32_0 = arith.constant 0 : i32
    return %c0_i32, %arg1 : i32, i32
  }
  func.func @transform_3(%arg0: i32, %arg1: i32, %arg2: i32) -> (i32, i32) {
    %c0_i32 = arith.constant 0 : i32
    return %arg0, %arg1 : i32, i32
  }
}

</mosaic_0001>

<llo_original>
// kernel: downsample_conv2d.1
$region0: #{downsample_conv2d.1}
  #allocation0 [shape = 'u32[]', space=smem, size = 0x4, offset = 0x4, fixed_abs, tag = 'smem constant byte address 0x4 - core index']
  #allocation1 [shape = 'u32[72,128]{1,0:T(1,128)}', space=vmem, size = 0x9000, scoped, tag = 'internal scratch']
  #allocation2 [shape = 'f32[128,4]{1,0:T(8,128)}', space=vmem, size = 0x10000, scoped, tag = 'scratch operand']
  %s0 = inlined_call_operand.vmem [shape: f32[128,36], index: 0, kind: input, shape index: {}]
  %s1 = inlined_call_operand.vmem [shape: f32[36,4], index: 1, kind: input, shape index: {}]
  %s2 = inlined_call_operand.vmem [shape: f32[1,4], index: 2, kind: input, shape index: {}]
  %s3 = inlined_call_operand.vmem [shape: f32[128,4], index: 3, kind: output, shape index: {}]
  %s4 = sld [smem:[#allocation0]]
  $region30: #{downsample_conv2d.1} parent=0
    _
  %s6 = ssub.s32 1, %s4
  %s7 = scalar_select 0, %s6, %s4
  // Predicated region
  $region2: #{downsample_conv2d.1} parent=0 // pred_check
    _
  $region3: #{downsample_conv2d.1} parent=0 // pred_check_branch
    %9 = sbr.rel (0) target = $region5
  $region4: #{downsample_conv2d.1} parent=0 // pred_region
    _
  $region5: #{downsample_conv2d.1} parent=0 // pred_fallthru
    _
  // Predicated region
  $region6: #{downsample_conv2d.1} parent=0 // pred_check
    _
  $region7: #{downsample_conv2d.1} parent=0 // pred_check_branch
    %11 = sbr.rel (0) target = $region9
  $region8: #{downsample_conv2d.1} parent=0 // pred_region
    _
  $region9: #{downsample_conv2d.1} parent=0 // pred_fallthru
    _
  // Predicated region
  $region10: #{downsample_conv2d.1} parent=0 // pred_check
    _
  $region11: #{downsample_conv2d.1} parent=0 // pred_check_branch
    %13 = sbr.rel (0) target = $region13
  $region12: #{downsample_conv2d.1} parent=0 // pred_region
    _
  $region13: #{downsample_conv2d.1} parent=0 // pred_fallthru
    _
  %p14 = scmp.eq.s32.totalorder 0, 0
  // Predicated region
  $region14: #{downsample_conv2d.1} parent=0 // pred_check
    %p15 = pneg %p14
  $region15: #{downsample_conv2d.1} parent=0 // pred_check_branch
    %17 = sbr.rel (%p15) target = $region17
  $region16: #{downsample_conv2d.1} parent=0 // pred_region
    %vm18 = vcmask 31744
    %19 = vst.msk [vmem:[#allocation2] sm:$0xff] %vm18, 0.0
    %20 = vst.msk [vmem:[#allocation2 + $0x8] sm:$0xff] %vm18, 0.0
    %21 = vst.msk [vmem:[#allocation2 + $0x10] sm:$0xff] %vm18, 0.0
    %22 = vst.msk [vmem:[#allocation2 + $0x18] sm:$0xff] %vm18, 0.0
    %23 = vst.msk [vmem:[#allocation2 + $0x20] sm:$0xff] %vm18, 0.0
    %24 = vst.msk [vmem:[#allocation2 + $0x28] sm:$0xff] %vm18, 0.0
    %25 = vst.msk [vmem:[#allocation2 + $0x30] sm:$0xff] %vm18, 0.0
    %26 = vst.msk [vmem:[#allocation2 + $0x38] sm:$0xff] %vm18, 0.0
    %27 = vst.msk [vmem:[#allocation2 + $0x40] sm:$0xff] %vm18, 0.0
    %28 = vst.msk [vmem:[#allocation2 + $0x48] sm:$0xff] %vm18, 0.0
    %29 = vst.msk [vmem:[#allocation2 + $0x50] sm:$0xff] %vm18, 0.0
    %30 = vst.msk [vmem:[#allocation2 + $0x58] sm:$0xff] %vm18, 0.0
    %31 = vst.msk [vmem:[#allocation2 + $0x60] sm:$0xff] %vm18, 0.0
    %32 = vst.msk [vmem:[#allocation2 + $0x68] sm:$0xff] %vm18, 0.0
    %33 = vst.msk [vmem:[#allocation2 + $0x70] sm:$0xff] %vm18, 0.0
    %34 = vst.msk [vmem:[#allocation2 + $0x78] sm:$0xff] %vm18, 0.0
  $region17: #{downsample_conv2d.1} parent=0 // pred_fallthru
    _
  %v35 = vld [vmem:[#allocation2] sm:$0xff]
  %v36 = vld [vmem:[#allocation2 + $0x8] sm:$0xff]
  %v37 = vld [vmem:[#allocation2 + $0x10] sm:$0xff]
  %v38 = vld [vmem:[#allocation2 + $0x18] sm:$0xff]
  %v39 = vld [vmem:[#allocation2 + $0x20] sm:$0xff]
  %v40 = vld [vmem:[#allocation2 + $0x28] sm:$0xff]
  %v41 = vld [vmem:[#allocation2 + $0x30] sm:$0xff]
  %v42 = vld [vmem:[#allocation2 + $0x38] sm:$0xff]
  %v43 = vld [vmem:[#allocation2 + $0x40] sm:$0xff]
  %v44 = vld [vmem:[#allocation2 + $0x48] sm:$0xff]
  %v45 = vld [vmem:[#allocation2 + $0x50] sm:$0xff]
  %v46 = vld [vmem:[#allocation2 + $0x58] sm:$0xff]
  %v47 = vld [vmem:[#allocation2 + $0x60] sm:$0xff]
  %v48 = vld [vmem:[#allocation2 + $0x68] sm:$0xff]
  %v49 = vld [vmem:[#allocation2 + $0x70] sm:$0xff]
  %v50 = vld [vmem:[#allocation2 + $0x78] sm:$0xff]
  %v51 = vld [vmem:[%s0] sm:$0xff]
  %v52 = vld [vmem:[%s0 + $0x8] sm:$0xff]
  %v53 = vld [vmem:[%s0 + $0x10] sm:$0xff]
  %v54 = vld [vmem:[%s0 + $0x18] sm:$0xff]
  %v55 = vld [vmem:[%s0 + $0x20] sm:$0xff]
  %v56 = vld [vmem:[%s0 + $0x28] sm:$0xff]
  %v57 = vld [vmem:[%s0 + $0x30] sm:$0xff]
  %v58 = vld [vmem:[%s0 + $0x38] sm:$0xff]
  %v59 = vld [vmem:[%s0 + $0x40] sm:$0xff]
  %v60 = vld [vmem:[%s0 + $0x48] sm:$0xff]
  %v61 = vld [vmem:[%s0 + $0x50] sm:$0xff]
  %v62 = vld [vmem:[%s0 + $0x58] sm:$0xff]
  %v63 = vld [vmem:[%s0 + $0x60] sm:$0xff]
  %v64 = vld [vmem:[%s0 + $0x68] sm:$0xff]
  %v65 = vld [vmem:[%s0 + $0x70] sm:$0xff]
  %v66 = vld [vmem:[%s0 + $0x78] sm:$0xff]
  %v67 = vld [vmem:[%s1] sm:$0xff]
  %v68 = vld [vmem:[%s1 + $0x8] sm:$0xff]
  %v69 = vld [vmem:[%s1 + $0x10] sm:$0xff]
  %v70 = vld [vmem:[%s1 + $0x18] sm:$0xff]
  %v71 = vld [vmem:[%s1 + $0x20] sm:$0xf]
  %vm72 = vcmask 293888
  %v74 = vsel %vm72, %v51, 0
  %v77 = vsel %vm72, %v52, 0
  %v80 = vsel %vm72, %v53, 0
  %v83 = vsel %vm72, %v54, 0
  %v86 = vsel %vm72, %v55, 0
  %v89 = vsel %vm72, %v56, 0
  %v92 = vsel %vm72, %v57, 0
  %v95 = vsel %vm72, %v58, 0
  %v98 = vsel %vm72, %v59, 0
  %v101 = vsel %vm72, %v60, 0
  %v104 = vsel %vm72, %v61, 0
  %v107 = vsel %vm72, %v62, 0
  %v110 = vsel %vm72, %v63, 0
  %v113 = vsel %vm72, %v64, 0
  %v116 = vsel %vm72, %v65, 0
  %v119 = vsel %vm72, %v66, 0
  %vm121 = vcmask 1043456
  %v123 = vsel %vm121, %v71, 0
  %125 = vmatpush.msra.mxu0 0.0
  %126 = vmatpush.msra.mxu0 0.0
  %127 = vmatpush.msra.mxu0 0.0
  %128 = vmatpush.msra.mxu0 0.0
  %129 = vmatpush.msra.mxu0 0.0
  %130 = vmatpush.msra.mxu0 0.0
  %131 = vmatpush.msra.mxu0 0.0
  %132 = vmatpush.msra.mxu0 0.0
  %133 = vmatpush.msra.mxu0 0.0
  %134 = vmatpush.msra.mxu0 0.0
  %135 = vmatpush.msra.mxu0 0.0
  %136 = vmatpush.msra.mxu0 %v123
  %137 = vmatpush.msra.mxu0 %v70
  %138 = vmatpush.msra.mxu0 %v69
  %139 = vmatpush.msra.mxu0 %v68
  %140 = vmatpush.msra.mxu0 %v67
  %141 = vmatmul.f32.gmra.mxu0 %v74
  %v142 = vpop.f32.mrf.mxu0
  %v143 = vadd.f32 0.0, %v142
  %144 = vmatmul.f32.gmra.mxu0 %v77
  %v145 = vpop.f32.mrf.mxu0
  %v146 = vadd.f32 0.0, %v145
  %147 = vmatmul.f32.gmra.mxu0 %v80
  %v148 = vpop.f32.mrf.mxu0
  %v149 = vadd.f32 0.0, %v148
  %150 = vmatmul.f32.gmra.mxu0 %v83
  %v151 = vpop.f32.mrf.mxu0
  %v152 = vadd.f32 0.0, %v151
  %153 = vmatmul.f32.gmra.mxu0 %v86
  %v154 = vpop.f32.mrf.mxu0
  %v155 = vadd.f32 0.0, %v154
  %156 = vmatmul.f32.gmra.mxu0 %v89
  %v157 = vpop.f32.mrf.mxu0
  %v158 = vadd.f32 0.0, %v157
  %159 = vmatmul.f32.gmra.mxu0 %v92
  %v160 = vpop.f32.mrf.mxu0
  %v161 = vadd.f32 0.0, %v160
  %162 = vmatmul.f32.gmra.mxu0 %v95
  %v163 = vpop.f32.mrf.mxu0
  %v164 = vadd.f32 0.0, %v163
  %165 = vmatmul.f32.gmra.mxu0 %v98
  %v166 = vpop.f32.mrf.mxu0
  %v167 = vadd.f32 0.0, %v166
  %168 = vmatmul.f32.gmra.mxu0 %v101
  %v169 = vpop.f32.mrf.mxu0
  %v170 = vadd.f32 0.0, %v169
  %171 = vmatmul.f32.gmra.mxu0 %v104
  %v172 = vpop.f32.mrf.mxu0
  %v173 = vadd.f32 0.0, %v172
  %174 = vmatmul.f32.gmra.mxu0 %v107
  %v175 = vpop.f32.mrf.mxu0
  %v176 = vadd.f32 0.0, %v175
  %177 = vmatmul.f32.gmra.mxu0 %v110
  %v178 = vpop.f32.mrf.mxu0
  %v179 = vadd.f32 0.0, %v178
  %180 = vmatmul.f32.gmra.mxu0 %v113
  %v181 = vpop.f32.mrf.mxu0
  %v182 = vadd.f32 0.0, %v181
  %183 = vmatmul.f32.gmra.mxu0 %v116
  %v184 = vpop.f32.mrf.mxu0
  %v185 = vadd.f32 0.0, %v184
  %186 = vmatmul.f32.gmra.mxu0 %v119
  %v187 = vpop.f32.mrf.mxu0
  %v188 = vadd.f32 0.0, %v187
  %189 = vdwg.mxu0
  %v190 = vadd.f32 %v35, %v143
  %v191 = vadd.f32 %v36, %v146
  %v192 = vadd.f32 %v37, %v149
  %v193 = vadd.f32 %v38, %v152
  %v194 = vadd.f32 %v39, %v155
  %v195 = vadd.f32 %v40, %v158
  %v196 = vadd.f32 %v41, %v161
  %v197 = vadd.f32 %v42, %v164
  %v198 = vadd.f32 %v43, %v167
  %v199 = vadd.f32 %v44, %v170
  %v200 = vadd.f32 %v45, %v173
  %v201 = vadd.f32 %v46, %v176
  %v202 = vadd.f32 %v47, %v179
  %v203 = vadd.f32 %v48, %v182
  %v204 = vadd.f32 %v49, %v185
  %v205 = vadd.f32 %v50, %v188
  %vm206 = vcmask 31744
  %207 = vst.msk [vmem:[#allocation2] sm:$0xff] %vm206, %v190
  %208 = vst.msk [vmem:[#allocation2 + $0x8] sm:$0xff] %vm206, %v191
  %209 = vst.msk [vmem:[#allocation2 + $0x10] sm:$0xff] %vm206, %v192
  %210 = vst.msk [vmem:[#allocation2 + $0x18] sm:$0xff] %vm206, %v193
  %211 = vst.msk [vmem:[#allocation2 + $0x20] sm:$0xff] %vm206, %v194
  %212 = vst.msk [vmem:[#allocation2 + $0x28] sm:$0xff] %vm206, %v195
  %213 = vst.msk [vmem:[#allocation2 + $0x30] sm:$0xff] %vm206, %v196
  %214 = vst.msk [vmem:[#allocation2 + $0x38] sm:$0xff] %vm206, %v197
  %215 = vst.msk [vmem:[#allocation2 + $0x40] sm:$0xff] %vm206, %v198
  %216 = vst.msk [vmem:[#allocation2 + $0x48] sm:$0xff] %vm206, %v199
  %217 = vst.msk [vmem:[#allocation2 + $0x50] sm:$0xff] %vm206, %v200
  %218 = vst.msk [vmem:[#allocation2 + $0x58] sm:$0xff] %vm206, %v201
  %219 = vst.msk [vmem:[#allocation2 + $0x60] sm:$0xff] %vm206, %v202
  %220 = vst.msk [vmem:[#allocation2 + $0x68] sm:$0xff] %vm206, %v203
  %221 = vst.msk [vmem:[#allocation2 + $0x70] sm:$0xff] %vm206, %v204
  %222 = vst.msk [vmem:[#allocation2 + $0x78] sm:$0xff] %vm206, %v205
  // Predicated region
  $region18: #{downsample_conv2d.1} parent=0 // pred_check
    %p223 = pneg %p14
  $region19: #{downsample_conv2d.1} parent=0 // pred_check_branch
    %225 = sbr.rel (%p223) target = $region21
  $region20: #{downsample_conv2d.1} parent=0 // pred_region
    %v226 = vld [vmem:[#allocation2] sm:$0xff]
    %v227 = vld [vmem:[#allocation2 + $0x8] sm:$0xff]
    %v228 = vld [vmem:[#allocation2 + $0x10] sm:$0xff]
    %v229 = vld [vmem:[#allocation2 + $0x18] sm:$0xff]
    %v230 = vld [vmem:[#allocation2 + $0x20] sm:$0xff]
    %v231 = vld [vmem:[#allocation2 + $0x28] sm:$0xff]
    %v232 = vld [vmem:[#allocation2 + $0x30] sm:$0xff]
    %v233 = vld [vmem:[#allocation2 + $0x38] sm:$0xff]
    %v234 = vld [vmem:[#allocation2 + $0x40] sm:$0xff]
    %v235 = vld [vmem:[#allocation2 + $0x48] sm:$0xff]
    %v236 = vld [vmem:[#allocation2 + $0x50] sm:$0xff]
    %v237 = vld [vmem:[#allocation2 + $0x58] sm:$0xff]
    %v238 = vld [vmem:[#allocation2 + $0x60] sm:$0xff]
    %v239 = vld [vmem:[#allocation2 + $0x68] sm:$0xff]
    %v240 = vld [vmem:[#allocation2 + $0x70] sm:$0xff]
    %v241 = vld [vmem:[#allocation2 + $0x78] sm:$0xff]
    %v242 = vld [vmem:[%s2] sm:$0x1]
    %v244 = vperm.slane %v242, 0
    %v246 = vadd.f32 %v226, %v244
    %v247 = vadd.f32 %v227, %v244
    %v248 = vadd.f32 %v228, %v244
    %v249 = vadd.f32 %v229, %v244
    %v250 = vadd.f32 %v230, %v244
    %v251 = vadd.f32 %v231, %v244
    %v252 = vadd.f32 %v232, %v244
    %v253 = vadd.f32 %v233, %v244
    %v254 = vadd.f32 %v234, %v244
    %v255 = vadd.f32 %v235, %v244
    %v256 = vadd.f32 %v236, %v244
    %v257 = vadd.f32 %v237, %v244
    %v258 = vadd.f32 %v238, %v244
    %v259 = vadd.f32 %v239, %v244
    %v260 = vadd.f32 %v240, %v244
    %v261 = vadd.f32 %v241, %v244
    %262 = vst.msk [vmem:[%s3] sm:$0xff] %vm206, %v246
    %263 = vst.msk [vmem:[%s3 + $0x8] sm:$0xff] %vm206, %v247
    %264 = vst.msk [vmem:[%s3 + $0x10] sm:$0xff] %vm206, %v248
    %265 = vst.msk [vmem:[%s3 + $0x18] sm:$0xff] %vm206, %v249
    %266 = vst.msk [vmem:[%s3 + $0x20] sm:$0xff] %vm206, %v250
    %267 = vst.msk [vmem:[%s3 + $0x28] sm:$0xff] %vm206, %v251
    %268 = vst.msk [vmem:[%s3 + $0x30] sm:$0xff] %vm206, %v252
    %269 = vst.msk [vmem:[%s3 + $0x38] sm:$0xff] %vm206, %v253
    %270 = vst.msk [vmem:[%s3 + $0x40] sm:$0xff] %vm206, %v254
    %271 = vst.msk [vmem:[%s3 + $0x48] sm:$0xff] %vm206, %v255
    %272 = vst.msk [vmem:[%s3 + $0x50] sm:$0xff] %vm206, %v256
    %273 = vst.msk [vmem:[%s3 + $0x58] sm:$0xff] %vm206, %v257
    %274 = vst.msk [vmem:[%s3 + $0x60] sm:$0xff] %vm206, %v258
    %275 = vst.msk [vmem:[%s3 + $0x68] sm:$0xff] %vm206, %v259
    %276 = vst.msk [vmem:[%s3 + $0x70] sm:$0xff] %vm206, %v260
    %277 = vst.msk [vmem:[%s3 + $0x78] sm:$0xff] %vm206, %v261
  $region21: #{downsample_conv2d.1} parent=0 // pred_fallthru
    _
  // Predicated region
  $region22: #{downsample_conv2d.1} parent=0 // pred_check
    _
  $region23: #{downsample_conv2d.1} parent=0 // pred_check_branch
    %279 = sbr.rel (0) target = $region25
  $region24: #{downsample_conv2d.1} parent=0 // pred_region
    _
  $region25: #{downsample_conv2d.1} parent=0 // pred_fallthru
    _
  // Predicated region
  $region26: #{downsample_conv2d.1} parent=0 // pred_check
    _
  $region27: #{downsample_conv2d.1} parent=0 // pred_check_branch
    %281 = sbr.rel (0) target = $region29
  $region28: #{downsample_conv2d.1} parent=0 // pred_region
    _
  $region29: #{downsample_conv2d.1} parent=0 // pred_fallthru
    _

</llo_original>
